<compile_context>
chip_gen: v7x
topology: tpu7x:2x2x1
jax: 0.10.0
libtpu: 0.0.40
codegen_flags: <defaults>
</compile_context>

<pallas_src>
import jax
import jax.numpy as jnp
from jax.experimental import pallas as pl
from jax.experimental.pallas import tpu as pltpu


def tdf_kernel(params_ref, x_ref, w1_ref, w2_ref, o_ref):
    # params_ref: (C, 4) f32 in SMEM -> [scale1, shift1, scale2, shift2] per channel
    c = pl.program_id(0)
    s1 = params_ref[c, 0]
    sh1 = params_ref[c, 1]
    s2 = params_ref[c, 2]
    sh2 = params_ref[c, 3]

    w1 = w1_ref[...]                     # (F, BN)  bf16, VMEM resident
    w2 = w2_ref[...]                     # (BN, F)  bf16, VMEM resident

    n_batch = x_ref.shape[0]
    for b in range(n_batch):             # static unroll; B is small
        xb = x_ref[b, 0]                 # (TT, F)
        # Linear1 on the MXU (bf16 operands, f32 accumulation)
        h = jnp.dot(xb, w1, preferred_element_type=jnp.float32)
        # folded BatchNorm2d #1 + ReLU (f32 on the VPU)
        h = jnp.maximum(h * s1 + sh1, 0.0)
        # Linear2 on the MXU (bf16 operands, f32 accumulation)
        y = jnp.dot(h.astype(w2.dtype), w2, preferred_element_type=jnp.float32)
        # folded BatchNorm2d #2 + ReLU
        y = jnp.maximum(y * s2 + sh2, 0.0)
        o_ref[b, 0] = y.astype(o_ref.dtype)


def _choose_row_tile(B, T, F, BN, itemsize, budget_bytes=40 * 1024 * 1024):
    """Largest T-tile whose double-buffered VMEM footprint fits the budget."""
    def footprint(tt):
        rows = B * tt
        io = 2 * rows * F * itemsize          # input block, double-buffered
        io += 2 * rows * F * itemsize         # output block, double-buffered
        w = 2 * (F * BN + BN * F) * itemsize  # w1 + w2 (conservative 2x)
        interm = rows * BN * 4 + rows * F * 4  # f32 intermediates (h, y)
        return io + w + interm

    if footprint(T) <= budget_bytes:
        return T
    tt = max((T // 8) * 8, 8)
    while tt > 8 and footprint(tt) > budget_bytes:
        tt -= 8
    return max(tt, 8)


def tdf_forward(x, w1, w2, params):
    """x: [B, C, T, F]. w1: [F, BN], w2: [BN, F] (transposed torch weights).
    params: [C, 4] f32 = [scale1, shift1, scale2, shift2] folded BN params."""
    B, C, T, F = x.shape
    BN = w1.shape[1]

    TT = _choose_row_tile(B, T, F, BN, x.dtype.itemsize)
    grid = (C, pl.cdiv(T, TT))

    flops = 4 * B * C * T * F * BN        # two matmuls, 2*M*N*K flops each
    bytes_accessed = (x.size * x.dtype.itemsize            # input
                      + x.size * x.dtype.itemsize          # output
                      + w1.size * w1.dtype.itemsize
                      + w2.size * w2.dtype.itemsize
                      + params.size * params.dtype.itemsize)

    return pl.pallas_call(
        tdf_kernel,
        out_shape=jax.ShapeDtypeStruct((B, C, T, F), x.dtype),
        grid_spec=pltpu.PrefetchScalarGridSpec(
            num_scalar_prefetch=0,
            grid=grid,
            in_specs=[
                pl.BlockSpec(memory_space=pltpu.MemorySpace.SMEM),        # params (C,4)
                pl.BlockSpec((B, 1, TT, F), lambda c, t: (0, c, t, 0)),   # x
                pl.BlockSpec((F, BN), lambda c, t: (0, 0)),               # w1
                pl.BlockSpec((BN, F), lambda c, t: (0, 0)),               # w2
            ],
            out_specs=pl.BlockSpec((B, 1, TT, F), lambda c, t: (0, c, t, 0)),
        ),
        compiler_params=pltpu.CompilerParams(
            dimension_semantics=("parallel", "parallel"),
            vmem_limit_bytes=48 * 1024 * 1024),
        cost_estimate=pl.CostEstimate(
            flops=flops, transcendentals=0, bytes_accessed=bytes_accessed),
    )(params, x, w1, w2)


def tdf_reference(x, w1, w2, params):
    """Precision-matched reference: f32 math with the same bf16 I/O casts."""
    xf = x.astype(jnp.float32)
    w1f = w1.astype(jnp.float32)
    w2f = w2.astype(jnp.float32)
    s1 = params[:, 0][None, :, None, None]
    sh1 = params[:, 1][None, :, None, None]
    s2 = params[:, 2][None, :, None, None]
    sh2 = params[:, 3][None, :, None, None]
    h = jnp.einsum("bctf,fk->bctk", xf, w1f)
    h = jnp.maximum(h * s1 + sh1, 0.0)
    h = h.astype(jnp.bfloat16).astype(jnp.float32)  # kernel feeds bf16 h to matmul #2
    y = jnp.einsum("bctk,kf->bctf", h, w2f)
    y = jnp.maximum(y * s2 + sh2, 0.0)
    return y.astype(jnp.bfloat16)


if __name__ == "__main__":
    # Module hyperparameters: TDF(channels=C, f=F, bn_factor=16, min_bn_units=16)
    B, C, T, F = 2, 4, 16, 16
    bn_factor, min_bn_units = 16, 16
    bn_units = max(F // bn_factor, min_bn_units)   # = 16
    eps = 1e-5

    key = jax.random.PRNGKey(0)
    keys = jax.random.split(key, 8)

    x_f32 = jax.random.normal(keys[0], (B, C, T, F), dtype=jnp.float32)

    # nn.Linear(F, bn_units, bias=False): torch weight is [bn_units, F]; we keep W^T.
    w1_f32 = (jax.random.normal(keys[1], (F, bn_units), dtype=jnp.float32)
              * (1.0 / jnp.sqrt(F)))
    w2_f32 = (jax.random.normal(keys[2], (bn_units, F), dtype=jnp.float32)
              * (1.0 / jnp.sqrt(bn_units)))

    # BatchNorm2d params (inference mode), folded into per-channel scale/shift.
    gamma1 = 1.0 + 0.1 * jax.random.normal(keys[3], (C,), dtype=jnp.float32)
    beta1 = 0.1 * jax.random.normal(keys[4], (C,), dtype=jnp.float32)
    rmean1 = 0.05 * jax.random.normal(keys[5], (C,), dtype=jnp.float32)
    rvar1 = jnp.abs(1.0 + 0.1 * jax.random.normal(keys[6], (C,), dtype=jnp.float32))
    gamma2 = jnp.linspace(0.8, 1.2, C, dtype=jnp.float32)
    beta2 = jnp.linspace(-0.1, 0.1, C, dtype=jnp.float32)
    rmean2 = jnp.linspace(-0.05, 0.05, C, dtype=jnp.float32)
    rvar2 = jnp.linspace(0.9, 1.1, C, dtype=jnp.float32)

    scale1 = gamma1 / jnp.sqrt(rvar1 + eps)
    shift1 = beta1 - rmean1 * scale1
    scale2 = gamma2 / jnp.sqrt(rvar2 + eps)
    shift2 = beta2 - rmean2 * scale2
    params = jnp.stack([scale1, shift1, scale2, shift2], axis=1)   # (C, 4) f32

    # bf16 I/O (mem-bound kernel: halves HBM traffic); compute stays f32.
    x = x_f32.astype(jnp.bfloat16)
    w1 = w1_f32.astype(jnp.bfloat16)
    w2 = w2_f32.astype(jnp.bfloat16)

    out = tdf_forward(x, w1, w2, params)
    out = jax.block_until_ready(out)

    ref = tdf_reference(x, w1, w2, params)
    assert out.shape == (B, C, T, F)
    assert out.dtype == jnp.bfloat16
    err = jnp.max(jnp.abs(out.astype(jnp.float32) - ref.astype(jnp.float32)))
    assert jnp.allclose(out.astype(jnp.float32), ref.astype(jnp.float32),
                        atol=2e-2, rtol=2e-2), f"mismatch vs reference (max abs err {err})"

    print("KERNEL_OK")
</pallas_src>

<mosaic_0001>
module attributes {stable_mosaic.version = 11 : i64} {
  func.func @tdf_kernel(%arg0: i32, %arg1: i32, %arg2: memref<4x4xf32, #tpu.memory_space<smem>>, %arg3: memref<2x1x16x16xbf16, #tpu.memory_space<vmem>>, %arg4: memref<16x16xbf16, #tpu.memory_space<vmem>>, %arg5: memref<16x16xbf16, #tpu.memory_space<vmem>>, %arg6: memref<2x1x16x16xbf16, #tpu.memory_space<vmem>>) attributes {dimension_semantics = [#tpu.dimension_semantics<parallel>, #tpu.dimension_semantics<parallel>], iteration_bounds = array<i64: 4, 1>, scalar_prefetch = 0 : i64, scratch_operands = 0 : i64, tpu.core_type = #tpu.core_type<tc>, window_params = [{transform_indices = @transform_0, window_bounds = array<i64: 4, 4>}, {transform_indices = @transform_1, window_bounds = array<i64: 2, 1, 16, 16>}, {pipeline_mode = #tpu.pipeline_mode<synchronous>, transform_indices = @transform_2, window_bounds = array<i64: 16, 16>}, {pipeline_mode = #tpu.pipeline_mode<synchronous>, transform_indices = @transform_3, window_bounds = array<i64: 16, 16>}, {transform_indices = @transform_4, window_bounds = array<i64: 2, 1, 16, 16>}]} {
    %0 = arith.index_cast %arg0 : i32 to index
    %c0 = arith.constant 0 : index
    %1 = memref.load %arg2[%0, %c0] : memref<4x4xf32, #tpu.memory_space<smem>>
    %2 = arith.index_cast %arg0 : i32 to index
    %c1 = arith.constant 1 : index
    %3 = memref.load %arg2[%2, %c1] : memref<4x4xf32, #tpu.memory_space<smem>>
    %4 = arith.index_cast %arg0 : i32 to index
    %c2 = arith.constant 2 : index
    %5 = memref.load %arg2[%4, %c2] : memref<4x4xf32, #tpu.memory_space<smem>>
    %6 = arith.index_cast %arg0 : i32 to index
    %c3 = arith.constant 3 : index
    %7 = memref.load %arg2[%6, %c3] : memref<4x4xf32, #tpu.memory_space<smem>>
    %c0_0 = arith.constant 0 : index
    %c0_1 = arith.constant 0 : index
    %8 = vector.load %arg4[%c0_0, %c0_1] : memref<16x16xbf16, #tpu.memory_space<vmem>>, vector<16x16xbf16>
    %c0_2 = arith.constant 0 : index
    %c0_3 = arith.constant 0 : index
    %9 = vector.load %arg5[%c0_2, %c0_3] : memref<16x16xbf16, #tpu.memory_space<vmem>>, vector<16x16xbf16>
    %c0_4 = arith.constant 0 : index
    %c0_5 = arith.constant 0 : index
    %c0_6 = arith.constant 0 : index
    %c0_7 = arith.constant 0 : index
    %10 = vector.load %arg3[%c0_4, %c0_5, %c0_6, %c0_7] : memref<2x1x16x16xbf16, #tpu.memory_space<vmem>>, vector<1x1x16x16xbf16>
    %11 = vector.shape_cast %10 : vector<1x1x16x16xbf16> to vector<16x16xbf16>
    %cst = arith.constant dense<0.000000e+00> : vector<16x16xf32>
    %12 = tpu.matmul %11, %8, %cst {dimension_numbers = #tpu.dot_dimension_numbers<[1], [0], [0], [1], [0, 0, 1, 1], [], []>} : vector<16x16xbf16>, vector<16x16xbf16>, vector<16x16xf32> -> vector<16x16xf32>
    %13 = vector.broadcast %1 : f32 to vector<16x16xf32>
    %14 = arith.mulf %12, %13 : vector<16x16xf32>
    %15 = vector.broadcast %3 : f32 to vector<16x16xf32>
    %16 = arith.addf %14, %15 : vector<16x16xf32>
    %cst_8 = arith.constant 0.000000e+00 : f32
    %17 = vector.broadcast %cst_8 : f32 to vector<16x16xf32>
    %18 = arith.maximumf %16, %17 : vector<16x16xf32>
    %19 = arith.truncf %18 : vector<16x16xf32> to vector<16x16xbf16>
    %cst_9 = arith.constant dense<0.000000e+00> : vector<16x16xf32>
    %20 = tpu.matmul %19, %9, %cst_9 {dimension_numbers = #tpu.dot_dimension_numbers<[1], [0], [0], [1], [0, 0, 1, 1], [], []>} : vector<16x16xbf16>, vector<16x16xbf16>, vector<16x16xf32> -> vector<16x16xf32>
    %21 = vector.broadcast %5 : f32 to vector<16x16xf32>
    %22 = arith.mulf %20, %21 : vector<16x16xf32>
    %23 = vector.broadcast %7 : f32 to vector<16x16xf32>
    %24 = arith.addf %22, %23 : vector<16x16xf32>
    %cst_10 = arith.constant 0.000000e+00 : f32
    %25 = vector.broadcast %cst_10 : f32 to vector<16x16xf32>
    %26 = arith.maximumf %24, %25 : vector<16x16xf32>
    %27 = arith.truncf %26 : vector<16x16xf32> to vector<16x16xbf16>
    %c0_11 = arith.constant 0 : index
    %c0_12 = arith.constant 0 : index
    %c0_13 = arith.constant 0 : index
    %c0_14 = arith.constant 0 : index
    %28 = vector.load %arg6[%c0_11, %c0_12, %c0_13, %c0_14] : memref<2x1x16x16xbf16, #tpu.memory_space<vmem>>, vector<1x1x16x16xbf16>
    %29 = vector.shape_cast %28 : vector<1x1x16x16xbf16> to vector<16x16xbf16>
    %30 = vector.shape_cast %27 : vector<16x16xbf16> to vector<1x1x16x16xbf16>
    tpu.vector_store %arg6[%c0_11, %c0_12, %c0_13, %c0_14], %30 {strides = array<i32>} : memref<2x1x16x16xbf16, #tpu.memory_space<vmem>>, vector<1x1x16x16xbf16>,
    %c1_15 = arith.constant 1 : index
    %c0_16 = arith.constant 0 : index
    %c0_17 = arith.constant 0 : index
    %c0_18 = arith.constant 0 : index
    %31 = vector.load %arg3[%c1_15, %c0_16, %c0_17, %c0_18] : memref<2x1x16x16xbf16, #tpu.memory_space<vmem>>, vector<1x1x16x16xbf16>
    %32 = vector.shape_cast %31 : vector<1x1x16x16xbf16> to vector<16x16xbf16>
    %cst_19 = arith.constant dense<0.000000e+00> : vector<16x16xf32>
    %33 = tpu.matmul %32, %8, %cst_19 {dimension_numbers = #tpu.dot_dimension_numbers<[1], [0], [0], [1], [0, 0, 1, 1], [], []>} : vector<16x16xbf16>, vector<16x16xbf16>, vector<16x16xf32> -> vector<16x16xf32>
    %34 = vector.broadcast %1 : f32 to vector<16x16xf32>
    %35 = arith.mulf %33, %34 : vector<16x16xf32>
    %36 = vector.broadcast %3 : f32 to vector<16x16xf32>
    %37 = arith.addf %35, %36 : vector<16x16xf32>
    %cst_20 = arith.constant 0.000000e+00 : f32
    %38 = vector.broadcast %cst_20 : f32 to vector<16x16xf32>
    %39 = arith.maximumf %37, %38 : vector<16x16xf32>
    %40 = arith.truncf %39 : vector<16x16xf32> to vector<16x16xbf16>
    %cst_21 = arith.constant dense<0.000000e+00> : vector<16x16xf32>
    %41 = tpu.matmul %40, %9, %cst_21 {dimension_numbers = #tpu.dot_dimension_numbers<[1], [0], [0], [1], [0, 0, 1, 1], [], []>} : vector<16x16xbf16>, vector<16x16xbf16>, vector<16x16xf32> -> vector<16x16xf32>
    %42 = vector.broadcast %5 : f32 to vector<16x16xf32>
    %43 = arith.mulf %41, %42 : vector<16x16xf32>
    %44 = vector.broadcast %7 : f32 to vector<16x16xf32>
    %45 = arith.addf %43, %44 : vector<16x16xf32>
    %cst_22 = arith.constant 0.000000e+00 : f32
    %46 = vector.broadcast %cst_22 : f32 to vector<16x16xf32>
    %47 = arith.maximumf %45, %46 : vector<16x16xf32>
    %48 = arith.truncf %47 : vector<16x16xf32> to vector<16x16xbf16>
    %c1_23 = arith.constant 1 : index
    %c0_24 = arith.constant 0 : index
    %c0_25 = arith.constant 0 : index
    %c0_26 = arith.constant 0 : index
    %49 = vector.load %arg6[%c1_23, %c0_24, %c0_25, %c0_26] : memref<2x1x16x16xbf16, #tpu.memory_space<vmem>>, vector<1x1x16x16xbf16>
    %50 = vector.shape_cast %49 : vector<1x1x16x16xbf16> to vector<16x16xbf16>
    %51 = vector.shape_cast %48 : vector<16x16xbf16> to vector<1x1x16x16xbf16>
    tpu.vector_store %arg6[%c1_23, %c0_24, %c0_25, %c0_26], %51 {strides = array<i32>} : memref<2x1x16x16xbf16, #tpu.memory_space<vmem>>, vector<1x1x16x16xbf16>,
    return
  }
  func.func @transform_0(%arg0: i32, %arg1: i32) -> (i32, i32) {
    %c0_i32 = arith.constant 0 : i32
    %c0_i32_0 = arith.constant 0 : i32
    %c0_i32_1 = arith.constant 0 : i32
    return %c0_i32, %c0_i32_0 : i32, i32
  }
  func.func @transform_1(%arg0: i32, %arg1: i32) -> (i32, i32, i32, i32) {
    %c0_i32 = arith.constant 0 : i32
    %c0_i32_0 = arith.constant 0 : i32
    %c0_i32_1 = arith.constant 0 : i32
    return %c0_i32, %arg0, %arg1, %c0_i32_0 : i32, i32, i32, i32
  }
  func.func @transform_2(%arg0: i32, %arg1: i32) -> (i32, i32) {
    %c0_i32 = arith.constant 0 : i32
    %c0_i32_0 = arith.constant 0 : i32
    %c0_i32_1 = arith.constant 0 : i32
    return %c0_i32, %c0_i32_0 : i32, i32
  }
  func.func @transform_3(%arg0: i32, %arg1: i32) -> (i32, i32) {
    %c0_i32 = arith.constant 0 : i32
    %c0_i32_0 = arith.constant 0 : i32
    %c0_i32_1 = arith.constant 0 : i32
    return %c0_i32, %c0_i32_0 : i32, i32
  }
  func.func @transform_4(%arg0: i32, %arg1: i32) -> (i32, i32, i32, i32) {
    %c0_i32 = arith.constant 0 : i32
    %c0_i32_0 = arith.constant 0 : i32
    %c0_i32_1 = arith.constant 0 : i32
    return %c0_i32, %arg0, %arg1, %c0_i32_0 : i32, i32, i32, i32
  }
}

</mosaic_0001>

<llo_original>
// kernel: tpu_custom_call.1
$region0: #{tpu_custom_call.1}
  #allocation0 [shape = 'u32[]', space=smem, size = 0x4, offset = 0x4, fixed_abs, tag = 'smem constant byte address 0x4 - core index']
  #allocation1 [shape = 'u32[144,128]{1,0:T(1,128)}', space=vmem, size = 0x12000, scoped, tag = 'internal scratch']
  #allocation10 [shape = 's32[]', space=sflag, size = 0x4, offset = 0, fixed_abs, tag = 'sflag constant byte address 0x0 - dummy sync flag']
  #allocation12 [shape = 's32[]', space=sflag, size = 0x4, offset = 0, fixed_abs, tag = 'sflag constant byte address 0x0 - dummy sync flag']
  %s0 = inlined_call_operand.hbm [shape: f32[4,4], index: 0, kind: input, shape index: {}]
  %s1 = inlined_call_operand.hbm [shape: bf16[2,4,16,16], index: 1, kind: input, shape index: {}]
  %s2 = inlined_call_operand.hbm [shape: bf16[16,16], index: 2, kind: input, shape index: {}]
  %s3 = inlined_call_operand.vmem [shape: bf16[16,16], index: 3, kind: input, shape index: {}]
  %s4 = inlined_call_operand.hbm [shape: bf16[2,4,16,16], index: 4, kind: output, shape index: {}]
  %s5 = sld [smem:[#allocation0]]
  $region61: #{tpu_custom_call.1} parent=0
    _
  %s7 = ssub.s32 1, %s5
  %s8 = scalar_select 0, %s7, %s5
  $region1: #{tpu_custom_call.1} parent=0
    #allocation2 [shape = 'u8[2048]{0}', space=smem, size = 0x800, scoped, tag = 'input window, operand 0, single buffered']
    #allocation3 [shape = 's32[2]{0}', space=sflag, size = 0x8, scoped, tag = 'scoped memory for tpu_custom_call.1']
    #allocation4 [shape = 's32[2]{0}', space=sflag, size = 0x8, scoped, tag = 'scoped memory for tpu_custom_call.1']
    #allocation5 [shape = 's32[2]{0}', space=sflag, size = 0x8, scoped, tag = 'scoped memory for tpu_custom_call.1']
    #allocation6 [shape = 'u8[16384]{0}', space=vmem, size = 0x4000, scoped, tag = 'input window, operand 1']
    #allocation7 [shape = 'u8[4096]{0}', space=vmem, size = 0x1000, scoped, tag = 'input window, operand 2, single buffered']
    #allocation8 [shape = 's32[1]{0}', space=sflag, size = 0x4, scoped, tag = 'scoped memory for tpu_custom_call.1']
    #allocation9 [shape = 'u8[16384]{0}', space=vmem, size = 0x4000, scoped, tag = 'output window, operand 0']
    %9 = vsyncpa [#allocation5], 0
    %10 = vsyncpa [#allocation3], 0
    %s11 = scalar_lea.sflag [#allocation3], 1
    %12 = vsyncpa %s11, 0
    %13 = vsyncpa [#allocation8], 0
    %14 = vsyncpa [#allocation4], 0
    %s15 = scalar_lea.sflag [#allocation4], 1
    %16 = vsyncpa %s15, 0
    loop: start=0, step=1, limit=6
    $region2: #{tpu_custom_call.1} parent=1 // loop_pre_header
      _
    $region3: #{tpu_custom_call.1} parent=1 // loop_header
      %s18 = sphi 0, %s22
      %p19 = scmp.ge.s32.totalorder %s18, 6
      %s25 = sphi 0, %s37
      %s26 = sphi 0, %s33
      %s27 = sphi 0, %s25
      %s28 = sphi 0, %s26
      %s29 = sphi 0, %s27
      %s30 = sphi 0, %s28
      %s38 = sphi 0, %s38
      %s40 = sphi 0, %s38
      %s41 = sphi 0, %s40
      %s55 = sphi 0, %s41
      %s63 = sphi 0, %s65
      %s66 = sphi 0, %s63
      %s67 = sphi 0, %s66
      %s83 = sphi 0, %s67
      %s87 = sphi 0, %s87
      %s89 = sphi 0, %s87
      %s90 = sphi 0, %s89
      %s104 = sphi 0, %s90
      %s108 = sphi 0, %s108
      %s110 = sphi 0, %s108
      %s111 = sphi 0, %s110
      %s125 = sphi 0, %s111
      %s133 = sphi 0, %s135
      %s136 = sphi 0, %s133
      %s137 = sphi 0, %s136
      %s153 = sphi 0, %s137
    $region4: #{tpu_custom_call.1} parent=1 // loop_header_branch
      %21 = sbr.rel (%p19) target = $region8
    $region5: #{tpu_custom_call.1} parent=1 // loop_body
      %s23 = ssub.s32 %s18, 1
      %s24 = ssub.s32 %s18, 2
      %s31 = sadd.s32 1, %s26
      %p32 = scmp.ge.s32.totalorder %s31, 1
      %s33 = scalar_select %p32, 0, %s31
      %s34 = sadd.s32 1, %s25
      %s35 = scalar_select %p32, %s34, %s25
      %p36 = scmp.ge.s32.totalorder %s35, 4
      %s37 = scalar_select %p36, 0, %s35
      %s39 = sadd.s32 %s38, 1
      %p42 = scmp.eq.s32.totalorder %s18, 3
      %p43 = scmp.ne.s32.totalorder %s38, %s40
      %p44 = scmp.eq.s32.totalorder %s18, 0
      %p45 = por %p43, %p44
      %p46 = scmp.ne.s32.totalorder %s38, %s40
      %p47 = scmp.eq.s32.totalorder %s23, 3
      %p48 = por %p46, %p47
      %p49 = scmp.ne.s32.totalorder %s40, %s41
      %p50 = scmp.eq.s32.totalorder %s23, 0
      %p51 = por %p49, %p50
      %p52 = scmp.ne.s32.totalorder %s40, %s41
      %p53 = scmp.eq.s32.totalorder %s24, 3
      %p54 = por %p52, %p53
      %p56 = scmp.ne.s32.totalorder %s41, %s55
      %p57 = scmp.eq.s32.totalorder %s24, 0
      %p58 = por %p56, %p57
      %s59 = ssub.s32 %s25, %s37
      %s60 = ssub.s32 %s26, %s33
      %s61 = sor.u32 %s59, %s60
      %p62 = scmp.eq.s32.totalorder %s61, 0
      %s64 = sadd.s32 %s63, 1
      %s65 = scalar_select %p62, %s63, %s64
      %p68 = pneg %p62
      %p69 = scmp.eq.s32.totalorder %s18, 3
      %p70 = por %p68, %p69
      %p71 = scmp.ne.s32.totalorder %s63, %s66
      %p72 = scmp.eq.s32.totalorder %s18, 0
      %p73 = por %p71, %p72
      %p74 = scmp.ne.s32.totalorder %s63, %s66
      %p75 = scmp.eq.s32.totalorder %s23, 3
      %p76 = por %p74, %p75
      %p77 = scmp.ne.s32.totalorder %s66, %s67
      %p78 = scmp.eq.s32.totalorder %s23, 0
      %p79 = por %p77, %p78
      %p80 = scmp.ne.s32.totalorder %s66, %s67
      %p81 = scmp.eq.s32.totalorder %s24, 3
      %p82 = por %p80, %p81
      %p84 = scmp.ne.s32.totalorder %s67, %s83
      %p85 = scmp.eq.s32.totalorder %s24, 0
      %p86 = por %p84, %p85
      %s88 = sadd.s32 %s87, 1
      %p91 = scmp.eq.s32.totalorder %s18, 3
      %p92 = scmp.ne.s32.totalorder %s87, %s89
      %p93 = scmp.eq.s32.totalorder %s18, 0
      %p94 = por %p92, %p93
      %p95 = scmp.ne.s32.totalorder %s87, %s89
      %p96 = scmp.eq.s32.totalorder %s23, 3
      %p97 = por %p95, %p96
      %p98 = scmp.ne.s32.totalorder %s89, %s90
      %p99 = scmp.eq.s32.totalorder %s23, 0
      %p100 = por %p98, %p99
      %p101 = scmp.ne.s32.totalorder %s89, %s90
      %p102 = scmp.eq.s32.totalorder %s24, 3
      %p103 = por %p101, %p102
      %p105 = scmp.ne.s32.totalorder %s90, %s104
      %p106 = scmp.eq.s32.totalorder %s24, 0
      %p107 = por %p105, %p106
      %s109 = sadd.s32 %s108, 1
      %p112 = scmp.eq.s32.totalorder %s18, 3
      %p113 = scmp.ne.s32.totalorder %s108, %s110
      %p114 = scmp.eq.s32.totalorder %s18, 0
      %p115 = por %p113, %p114
      %p116 = scmp.ne.s32.totalorder %s108, %s110
      %p117 = scmp.eq.s32.totalorder %s23, 3
      %p118 = por %p116, %p117
      %p119 = scmp.ne.s32.totalorder %s110, %s111
      %p120 = scmp.eq.s32.totalorder %s23, 0
      %p121 = por %p119, %p120
      %p122 = scmp.ne.s32.totalorder %s110, %s111
      %p123 = scmp.eq.s32.totalorder %s24, 3
      %p124 = por %p122, %p123
      %p126 = scmp.ne.s32.totalorder %s111, %s125
      %p127 = scmp.eq.s32.totalorder %s24, 0
      %p128 = por %p126, %p127
      %s129 = ssub.s32 %s25, %s37
      %s130 = ssub.s32 %s26, %s33
      %s131 = sor.u32 %s129, %s130
      %p132 = scmp.eq.s32.totalorder %s131, 0
      %s134 = sadd.s32 %s133, 1
      %s135 = scalar_select %p132, %s133, %s134
      %p138 = pneg %p132
      %p139 = scmp.eq.s32.totalorder %s18, 3
      %p140 = por %p138, %p139
      %p141 = scmp.ne.s32.totalorder %s133, %s136
      %p142 = scmp.eq.s32.totalorder %s18, 0
      %p143 = por %p141, %p142
      %p144 = scmp.ne.s32.totalorder %s133, %s136
      %p145 = scmp.eq.s32.totalorder %s23, 3
      %p146 = por %p144, %p145
      %p147 = scmp.ne.s32.totalorder %s136, %s137
      %p148 = scmp.eq.s32.totalorder %s23, 0
      %p149 = por %p147, %p148
      %p150 = scmp.ne.s32.totalorder %s136, %s137
      %p151 = scmp.eq.s32.totalorder %s24, 3
      %p152 = por %p150, %p151
      %p154 = scmp.ne.s32.totalorder %s137, %s153
      %p155 = scmp.eq.s32.totalorder %s24, 0
      %p156 = por %p154, %p155
      %p157 = scmp.le.s32.totalorder 1, %s18
      %p158 = scmp.lt.s32.totalorder %s18, 5
      %p159 = pnand %p157, %p158
      %p160 = pneg %p159
      // Predicated region
      $region9: #{tpu_custom_call.1} parent=5 // pred_check
        _
      $region10: #{tpu_custom_call.1} parent=5 // pred_check_branch
        %162 = sbr.rel (%p159) target = $region12
      $region11: #{tpu_custom_call.1} parent=5 // pred_region
        %s163 = ssub.s32 %s18, 1
        // Predicated region
        $region13: #{tpu_custom_call.1} parent=11 // pred_check
          %p164 = pneg %p51
        $region14: #{tpu_custom_call.1} parent=11 // pred_check_branch
          %166 = sbr.rel (%p164) target = $region16
        $region15: #{tpu_custom_call.1} parent=11 // pred_region
          %s168 = ssub.s32 64, 64
          %169 = vsyncadd [#allocation5], %s168
          %172 = dma.hbm_to_smem %s0, 64, [#allocation2], [#allocation5]
        $region16: #{tpu_custom_call.1} parent=11 // pred_fallthru
          _
        // Predicated region
        $region17: #{tpu_custom_call.1} parent=11 // pred_check
          %p173 = pneg %p100
        $region18: #{tpu_custom_call.1} parent=11 // pred_check_branch
          %175 = sbr.rel (%p173) target = $region20
        $region19: #{tpu_custom_call.1} parent=11 // pred_region
          %s177 = ssub.s32 128, 128
          %178 = vsyncadd [#allocation8], %s177
          %s179 = sshll.u32 [#allocation7], 4
          %s180 = int_to_ptr.vmem [resolvable:$true] %s179
          %185 = dma.hbm_to_vmem [thread:$0]  %s2, 128, %s180, [#allocation8], 64, 64, 4
        $region20: #{tpu_custom_call.1} parent=11 // pred_fallthru
          _
        // Predicated region
        $region21: #{tpu_custom_call.1} parent=11 // pred_check
          %p186 = pneg %p121
        $region22: #{tpu_custom_call.1} parent=11 // pred_check_branch
          %188 = sbr.rel (%p186) target = $region24
        $region23: #{tpu_custom_call.1} parent=11 // pred_region
          _
        $region24: #{tpu_custom_call.1} parent=11 // pred_fallthru
          _
      $region12: #{tpu_custom_call.1} parent=5 // pred_fallthru
        _
      %p189 = scmp.lt.s32.totalorder %s18, 4
      // Predicated region
      $region25: #{tpu_custom_call.1} parent=5 // pred_check
        %p190 = pneg %p189
      $region26: #{tpu_custom_call.1} parent=5 // pred_check_branch
        %192 = sbr.rel (%p190) target = $region28
      $region27: #{tpu_custom_call.1} parent=5 // pred_region
        // Predicated region
        $region29: #{tpu_custom_call.1} parent=27 // pred_check
          %p193 = pneg %p73
        $region30: #{tpu_custom_call.1} parent=27 // pred_check_branch
          %195 = sbr.rel (%p193) target = $region32
        $region31: #{tpu_custom_call.1} parent=27 // pred_region
          #allocation11 [shape = 'u32[6]{0}', space=smem, size = 0x18, scoped, tag = 'DMA stride descriptor']
          %s196 = sand.u32 %s63, 1
          %s197 = scalar_lea.sflag [#allocation3], %s196
          %s198 = sand.u32 %s63, 1
          %s199 = smul.addr %s198, 16
          %s200 = scalar_lea.vmem [#allocation6], %s199
          %s201 = smul.u32 2, %s26
          %s203 = ssub.s32 256, 256
          %204 = vsyncadd %s197, %s203
          %s205 = smul.addr %s25, 2
          %s206 = sadd.s32 %s201, %s205
          %s207 = smul.addr %s206, 64
          %s208 = scalar_lea.hbm %s1, %s207
          %s210 = sshll.u32 1, 14
          %s211 = sxor.u32 4294967295, %s210
          %s213 = sld [smem:[#allocation0]]
          %s214 = sadd.s32 2, %s213
          %s216 = sshll.u32 7, 26
          %s217 = sxor.u32 4294967295, %s216
          %s218 = sand.u32 0, %s217
          %s219 = sshll.u32 %s214, 26
          %s220 = sor.u32 %s218, %s219
          %s221 = sshll.u32 %s200, 4
          %s222 = int_to_ptr.vmem [resolvable:$true] %s221
          %228 = sst [smem:[#allocation11]] 512
          %s229 = scalar_lea.smem [#allocation11], 1
          %230 = sst [smem:[%s229]] 128
          %s231 = scalar_lea.smem [#allocation11], 2
          %232 = sst [smem:[%s231]] 2
          %s233 = scalar_lea.smem [#allocation11], 3
          %234 = sst [smem:[%s233]] 64
          %s235 = scalar_lea.smem [#allocation11], 4
          %236 = sst [smem:[%s235]] 64
          %s237 = scalar_lea.smem [#allocation11], 5
          %238 = sst [smem:[%s237]] 4
          %240 = dma.general %s208, 256, %s222, %s197, [#allocation10], [#allocation11], %s220, 0
        $region32: #{tpu_custom_call.1} parent=27 // pred_fallthru
          _
      $region28: #{tpu_custom_call.1} parent=5 // pred_fallthru
        _
      %p241 = scmp.le.s32.totalorder 1, %s18
      %p242 = scmp.lt.s32.totalorder %s18, 5
      %p243 = pnand %p241, %p242
      %p244 = pneg %p243
      // Predicated region
      $region33: #{tpu_custom_call.1} parent=5 // pred_check
        _
      $region34: #{tpu_custom_call.1} parent=5 // pred_check_branch
        %246 = sbr.rel (%p243) target = $region36
      $region35: #{tpu_custom_call.1} parent=5 // pred_region
        %s247 = ssub.s32 %s18, 1
        // Predicated region
        $region37: #{tpu_custom_call.1} parent=35 // pred_check
          %p248 = pneg %p51
        $region38: #{tpu_custom_call.1} parent=35 // pred_check_branch
          %250 = sbr.rel (%p248) target = $region40
        $region39: #{tpu_custom_call.1} parent=35 // pred_region
          %251 = dma.done [#allocation5], 64
        $region40: #{tpu_custom_call.1} parent=35 // pred_fallthru
          _
        %s252 = sand.u32 %s66, 1
        %s253 = scalar_lea.sflag [#allocation3], %s252
        %s254 = sand.u32 %s66, 1
        %s255 = smul.addr %s254, 16
        %s256 = scalar_lea.vmem [#allocation6], %s255
        // Predicated region
        $region41: #{tpu_custom_call.1} parent=35 // pred_check
          %p257 = pneg %p79
        $region42: #{tpu_custom_call.1} parent=35 // pred_check_branch
          %259 = sbr.rel (%p257) target = $region44
        $region43: #{tpu_custom_call.1} parent=35 // pred_region
          %260 = dma.done %s253, 256
        $region44: #{tpu_custom_call.1} parent=35 // pred_fallthru
          _
        // Predicated region
        $region45: #{tpu_custom_call.1} parent=35 // pred_check
          %p261 = pneg %p100
        $region46: #{tpu_custom_call.1} parent=35 // pred_check_branch
          %263 = sbr.rel (%p261) target = $region48
        $region47: #{tpu_custom_call.1} parent=35 // pred_region
          %264 = dma.done [#allocation8], 128
        $region48: #{tpu_custom_call.1} parent=35 // pred_fallthru
          _
        %265 = sfence
        %p266 = pneg %p51
        %p267 = pneg %p48
        %s268 = sand.u32 %s66, 1
        %s269 = scalar_lea.sflag [#allocation3], %s268
        %s270 = sand.u32 %s66, 1
        %s271 = smul.addr %s270, 16
        %s272 = scalar_lea.vmem [#allocation6], %s271
        %p273 = pneg %p79
        %p274 = pneg %p76
        %p275 = pneg %p100
        %p276 = pneg %p97
        %p277 = pneg %p121
        %p278 = pneg %p118
        %p279 = pneg %p149
        %p280 = pneg %p146
        %s281 = sand.u32 %s136, 1
        %s282 = scalar_lea.sflag [#allocation4], %s281
        %s283 = sand.u32 %s136, 1
        %s284 = smul.addr %s283, 16
        %s285 = scalar_lea.vmem [#allocation9], %s284
        %s286 = smul.u32 2, %s28
        %s287 = smul.u32 2, %s28
        %s289 = smul.u32 %s27, 128
        %s290 = sld [smem:[#allocation2 + %s289]]
        %s291 = sadd.s32 %s289, 1
        %s292 = sld [smem:[#allocation2 + %s291]]
        %s293 = sadd.s32 %s289, 2
        %s294 = sld [smem:[#allocation2 + %s293]]
        %s295 = sadd.s32 %s289, 3
        %s296 = sld [smem:[#allocation2 + %s295]]
        %v297 = vld [vmem:[#allocation7] sm:$0xf]
        %v298 = vld [vmem:[#allocation7 + $0x4] sm:$0xf]
        %v299 = vld [vmem:[%s3] sm:$0xf]
        %v300 = vld [vmem:[%s3 + $0x4] sm:$0xf]
        %v301 = vld [vmem:[%s256] sm:$0xf]
        %v302 = vld [vmem:[%s256 + $0x4] sm:$0xf]
        %v305 = vunpack.c.l.b16 %v301
        %v306 = vunpack.c.l.b16 %v302
        %v307 = vpack.c.b16 %v306, %v305
        %v310 = vunpack.c.l.b16 %v297
        %v311 = vunpack.c.l.b16 %v298
        %v312 = vpack.c.b16 %v311, %v310
        %vm314 = vcmask 130048
        %v316 = vsel %vm314, %v307, 0
        %318 = vmatprep.subr.bf16.mxu0 0
        %319 = vmatpush1.bf16.msra.mxu0 %v312
        %320 = vmatprep.subr.bf16.mxu0 0
        %321 = vmatpush1.bf16.msra.mxu0 0
        %322 = vmatprep.subr.bf16.mxu0 0
        %323 = vmatpush1.bf16.msra.mxu0 0
        %324 = vmatprep.subr.bf16.mxu0 0
        %325 = vmatpush1.bf16.msra.mxu0 0
        %326 = vmatprep.subr.bf16.mxu0 0
        %327 = vmatpush1.bf16.msra.mxu0 0
        %328 = vmatprep.subr.bf16.mxu0 0
        %329 = vmatpush1.bf16.msra.mxu0 0
        %330 = vmatprep.subr.bf16.mxu0 0
        %331 = vmatpush1.bf16.msra.mxu0 0
        %332 = vmatprep.subr.bf16.mxu0 0
        %333 = vmatpush1.bf16.msra.mxu0 0
        %334 = vmatprep.subr.bf16.mxu0 0
        %335 = vmatpush1.bf16.msra.mxu0 0
        %336 = vmatprep.subr.bf16.mxu0 0
        %337 = vmatpush1.bf16.msra.mxu0 0
        %338 = vmatprep.subr.bf16.mxu0 0
        %339 = vmatpush1.bf16.msra.mxu0 0
        %340 = vmatprep.subr.bf16.mxu0 0
        %341 = vmatpush1.bf16.msra.mxu0 0
        %342 = vmatprep.subr.bf16.mxu0 0
        %343 = vmatpush1.bf16.msra.mxu0 0
        %344 = vmatprep.subr.bf16.mxu0 0
        %345 = vmatpush1.bf16.msra.mxu0 0
        %346 = vmatprep.subr.bf16.mxu0 0
        %347 = vmatpush1.bf16.msra.mxu0 0
        %348 = vmatprep.subr.bf16.mxu0 0
        %349 = vmatpush1.bf16.msra.mxu0 0
        %350 = vmatprep.mubr.bf16.mxu0 0
        %351 = vmatmul.mubr.bf16.gmra.mrb[0].mxu0 %v316
        %v352 = vpop.f32.mrb[0].mxu0
        %v353 = vadd.f32 0.0, %v352
        %v354 = vpop.f32.mrb[0].mxu0
        %v355 = vpop.f32.mrb[0].mxu0
        %v356 = vadd.f32 0.0, %v355
        %v357 = vpop.f32.mrb[0].mxu0
        %358 = vdwg.mxu0
        %v359 = vstv %s290
        %v360 = vmul.f32 %v353, %v359
        %v361 = vmul.f32 %v356, %v359
        %v362 = vstv %s292
        %v363 = vadd.f32 %v360, %v362
        %v364 = vadd.f32 %v361, %v362
        %v365 = vmax.f32 %v363, 0.0
        %v366 = vmax.f32 %v364, 0.0
        %v367 = vpack.c.bf16 %v366, %v365
        %v370 = vunpack.c.l.b16 %v299
        %v371 = vunpack.c.l.b16 %v300
        %v372 = vpack.c.b16 %v371, %v370
        %v375 = vsel %vm314, %v367, 0
        %377 = vmatprep.subr.bf16.mxu0 0
        %378 = vmatpush1.bf16.msra.mxu0 %v372
        %379 = vmatprep.subr.bf16.mxu0 0
        %380 = vmatpush1.bf16.msra.mxu0 0
        %381 = vmatprep.subr.bf16.mxu0 0
        %382 = vmatpush1.bf16.msra.mxu0 0
        %383 = vmatprep.subr.bf16.mxu0 0
        %384 = vmatpush1.bf16.msra.mxu0 0
        %385 = vmatprep.subr.bf16.mxu0 0
        %386 = vmatpush1.bf16.msra.mxu0 0
        %387 = vmatprep.subr.bf16.mxu0 0
        %388 = vmatpush1.bf16.msra.mxu0 0
        %389 = vmatprep.subr.bf16.mxu0 0
        %390 = vmatpush1.bf16.msra.mxu0 0
        %391 = vmatprep.subr.bf16.mxu0 0
        %392 = vmatpush1.bf16.msra.mxu0 0
        %393 = vmatprep.subr.bf16.mxu0 0
        %394 = vmatpush1.bf16.msra.mxu0 0
        %395 = vmatprep.subr.bf16.mxu0 0
        %396 = vmatpush1.bf16.msra.mxu0 0
        %397 = vmatprep.subr.bf16.mxu0 0
        %398 = vmatpush1.bf16.msra.mxu0 0
        %399 = vmatprep.subr.bf16.mxu0 0
        %400 = vmatpush1.bf16.msra.mxu0 0
        %401 = vmatprep.subr.bf16.mxu0 0
        %402 = vmatpush1.bf16.msra.mxu0 0
        %403 = vmatprep.subr.bf16.mxu0 0
        %404 = vmatpush1.bf16.msra.mxu0 0
        %405 = vmatprep.subr.bf16.mxu0 0
        %406 = vmatpush1.bf16.msra.mxu0 0
        %407 = vmatprep.subr.bf16.mxu0 0
        %408 = vmatpush1.bf16.msra.mxu0 0
        %409 = vmatprep.mubr.bf16.mxu0 0
        %410 = vmatmul.mubr.bf16.gmra.mrb[0].mxu0 %v375
        %v411 = vpop.f32.mrb[0].mxu0
        %v412 = vadd.f32 0.0, %v411
        %v413 = vpop.f32.mrb[0].mxu0
        %v414 = vpop.f32.mrb[0].mxu0
        %v415 = vadd.f32 0.0, %v414
        %v416 = vpop.f32.mrb[0].mxu0
        %417 = vdwg.mxu0
        %v418 = vstv %s294
        %v419 = vmul.f32 %v412, %v418
        %v420 = vmul.f32 %v415, %v418
        %v421 = vstv %s296
        %v422 = vadd.f32 %v419, %v421
        %v423 = vadd.f32 %v420, %v421
        %v424 = vmax.f32 %v422, 0.0
        %v425 = vmax.f32 %v423, 0.0
        %v426 = vpack.c.bf16 %v425, %v424
        %v428 = vunpack.c.l.b16 %v426
        %v429 = vunpack.c.h.b16 %v426
        %v430 = vpack.c.b16 %v428, %v428
        %v431 = vpack.c.b16 %v429, %v429
        %vm434 = vcmask 125952
        %435 = vst.msk [vmem:[%s285] sm:$0xf] %vm434, %v430
        %436 = vst.msk [vmem:[%s285 + $0x4] sm:$0xf] %vm434, %v431
        %s437 = scalar_lea.vmem %s256, 8 [#allocation6]
        %v438 = vld [vmem:[%s437] sm:$0xf]
        %v439 = vld [vmem:[%s437 + $0x4] sm:$0xf]
        %v442 = vunpack.c.l.b16 %v438
        %v443 = vunpack.c.l.b16 %v439
        %v444 = vpack.c.b16 %v443, %v442
        %v446 = vsel %vm314, %v444, 0
        %448 = vmatprep.subr.bf16.mxu0 0
        %449 = vmatpush1.bf16.msra.mxu0 %v312
        %450 = vmatprep.subr.bf16.mxu0 0
        %451 = vmatpush1.bf16.msra.mxu0 0
        %452 = vmatprep.subr.bf16.mxu0 0
        %453 = vmatpush1.bf16.msra.mxu0 0
        %454 = vmatprep.subr.bf16.mxu0 0
        %455 = vmatpush1.bf16.msra.mxu0 0
        %456 = vmatprep.subr.bf16.mxu0 0
        %457 = vmatpush1.bf16.msra.mxu0 0
        %458 = vmatprep.subr.bf16.mxu0 0
        %459 = vmatpush1.bf16.msra.mxu0 0
        %460 = vmatprep.subr.bf16.mxu0 0
        %461 = vmatpush1.bf16.msra.mxu0 0
        %462 = vmatprep.subr.bf16.mxu0 0
        %463 = vmatpush1.bf16.msra.mxu0 0
        %464 = vmatprep.subr.bf16.mxu0 0
        %465 = vmatpush1.bf16.msra.mxu0 0
        %466 = vmatprep.subr.bf16.mxu0 0
        %467 = vmatpush1.bf16.msra.mxu0 0
        %468 = vmatprep.subr.bf16.mxu0 0
        %469 = vmatpush1.bf16.msra.mxu0 0
        %470 = vmatprep.subr.bf16.mxu0 0
        %471 = vmatpush1.bf16.msra.mxu0 0
        %472 = vmatprep.subr.bf16.mxu0 0
        %473 = vmatpush1.bf16.msra.mxu0 0
        %474 = vmatprep.subr.bf16.mxu0 0
        %475 = vmatpush1.bf16.msra.mxu0 0
        %476 = vmatprep.subr.bf16.mxu0 0
        %477 = vmatpush1.bf16.msra.mxu0 0
        %478 = vmatprep.subr.bf16.mxu0 0
        %479 = vmatpush1.bf16.msra.mxu0 0
        %480 = vmatprep.mubr.bf16.mxu0 0
        %481 = vmatmul.mubr.bf16.gmra.mrb[0].mxu0 %v446
        %v482 = vpop.f32.mrb[0].mxu0
        %v483 = vadd.f32 0.0, %v482
        %v484 = vpop.f32.mrb[0].mxu0
        %v485 = vpop.f32.mrb[0].mxu0
        %v486 = vadd.f32 0.0, %v485
        %v487 = vpop.f32.mrb[0].mxu0
        %488 = vdwg.mxu0
        %v489 = vmul.f32 %v483, %v359
        %v490 = vmul.f32 %v486, %v359
        %v491 = vadd.f32 %v489, %v362
        %v492 = vadd.f32 %v490, %v362
        %v493 = vmax.f32 %v491, 0.0
        %v494 = vmax.f32 %v492, 0.0
        %v495 = vpack.c.bf16 %v494, %v493
        %v497 = vsel %vm314, %v495, 0
        %499 = vmatprep.subr.bf16.mxu0 0
        %500 = vmatpush1.bf16.msra.mxu0 %v372
        %501 = vmatprep.subr.bf16.mxu0 0
        %502 = vmatpush1.bf16.msra.mxu0 0
        %503 = vmatprep.subr.bf16.mxu0 0
        %504 = vmatpush1.bf16.msra.mxu0 0
        %505 = vmatprep.subr.bf16.mxu0 0
        %506 = vmatpush1.bf16.msra.mxu0 0
        %507 = vmatprep.subr.bf16.mxu0 0
        %508 = vmatpush1.bf16.msra.mxu0 0
        %509 = vmatprep.subr.bf16.mxu0 0
        %510 = vmatpush1.bf16.msra.mxu0 0
        %511 = vmatprep.subr.bf16.mxu0 0
        %512 = vmatpush1.bf16.msra.mxu0 0
        %513 = vmatprep.subr.bf16.mxu0 0
        %514 = vmatpush1.bf16.msra.mxu0 0
        %515 = vmatprep.subr.bf16.mxu0 0
        %516 = vmatpush1.bf16.msra.mxu0 0
        %517 = vmatprep.subr.bf16.mxu0 0
        %518 = vmatpush1.bf16.msra.mxu0 0
        %519 = vmatprep.subr.bf16.mxu0 0
        %520 = vmatpush1.bf16.msra.mxu0 0
        %521 = vmatprep.subr.bf16.mxu0 0
        %522 = vmatpush1.bf16.msra.mxu0 0
        %523 = vmatprep.subr.bf16.mxu0 0
        %524 = vmatpush1.bf16.msra.mxu0 0
        %525 = vmatprep.subr.bf16.mxu0 0
        %526 = vmatpush1.bf16.msra.mxu0 0
        %527 = vmatprep.subr.bf16.mxu0 0
        %528 = vmatpush1.bf16.msra.mxu0 0
        %529 = vmatprep.subr.bf16.mxu0 0
        %530 = vmatpush1.bf16.msra.mxu0 0
        %531 = vmatprep.mubr.bf16.mxu0 0
        %532 = vmatmul.mubr.bf16.gmra.mrb[0].mxu0 %v497
        %v533 = vpop.f32.mrb[0].mxu0
        %v534 = vadd.f32 0.0, %v533
        %v535 = vpop.f32.mrb[0].mxu0
        %v536 = vpop.f32.mrb[0].mxu0
        %v537 = vadd.f32 0.0, %v536
        %v538 = vpop.f32.mrb[0].mxu0
        %539 = vdwg.mxu0
        %v540 = vmul.f32 %v534, %v418
        %v541 = vmul.f32 %v537, %v418
        %v542 = vadd.f32 %v540, %v421
        %v543 = vadd.f32 %v541, %v421
        %v544 = vmax.f32 %v542, 0.0
        %v545 = vmax.f32 %v543, 0.0
        %v546 = vpack.c.bf16 %v545, %v544
        %v548 = vunpack.c.l.b16 %v546
        %v549 = vunpack.c.h.b16 %v546
        %v550 = vpack.c.b16 %v548, %v548
        %v551 = vpack.c.b16 %v549, %v549
        %s554 = scalar_lea.vmem %s285, 8 [#allocation9]
        %555 = vst.msk [vmem:[%s554] sm:$0xf] %vm434, %v550
        %556 = vst.msk [vmem:[%s554 + $0x4] sm:$0xf] %vm434, %v551
        %s557 = sand.u32 %s136, 1
        %s558 = scalar_lea.sflag [#allocation4], %s557
        %s559 = sand.u32 %s136, 1
        %s560 = smul.addr %s559, 16
        %s561 = scalar_lea.vmem [#allocation9], %s560
        // Predicated region
        $region49: #{tpu_custom_call.1} parent=35 // pred_check
          %p562 = pneg %p146
        $region50: #{tpu_custom_call.1} parent=35 // pred_check_branch
          %564 = sbr.rel (%p562) target = $region52
        $region51: #{tpu_custom_call.1} parent=35 // pred_region
          #allocation13 [shape = 'u32[6]{0}', space=smem, size = 0x18, scoped, tag = 'DMA stride descriptor']
          %s565 = smul.u32 2, %s28
          %s567 = ssub.s32 256, 256
          %568 = vsyncadd %s558, %s567
          %s569 = smul.addr %s27, 2
          %s570 = sadd.s32 %s565, %s569
          %s571 = smul.addr %s570, 64
          %s572 = scalar_lea.hbm %s4, %s571
          %s574 = sshll.u32 1, 14
          %s575 = sxor.u32 4294967295, %s574
          %s578 = sshll.u32 7, 18
          %s579 = sxor.u32 4294967295, %s578
          %s580 = sand.u32 0, %s579
          %s582 = sor.u32 %s580, 0
          %s584 = sshll.u32 3, 24
          %s585 = sxor.u32 4294967295, %s584
          %s586 = sand.u32 %s582, %s585
          %s588 = sor.u32 %s586, 0
          %s589 = sshll.u32 %s561, 4
          %s590 = int_to_ptr.vmem [resolvable:$true] %s589
          %596 = sst [smem:[#allocation13]] 128
          %s597 = scalar_lea.smem [#allocation13], 1
          %598 = sst [smem:[%s597]] 512
          %s599 = scalar_lea.smem [#allocation13], 2
          %600 = sst [smem:[%s599]] 2
          %s601 = scalar_lea.smem [#allocation13], 3
          %602 = sst [smem:[%s601]] 64
          %s603 = scalar_lea.smem [#allocation13], 4
          %604 = sst [smem:[%s603]] 64
          %s605 = scalar_lea.smem [#allocation13], 5
          %606 = sst [smem:[%s605]] 4
          %608 = dma.general %s590, 256, %s572, %s558, [#allocation12], [#allocation13], %s588, 0
        $region52: #{tpu_custom_call.1} parent=35 // pred_fallthru
          _
      $region36: #{tpu_custom_call.1} parent=5 // pred_fallthru
        _
      %p609 = scmp.le.s32.totalorder 2, %s18
      // Predicated region
      $region53: #{tpu_custom_call.1} parent=5 // pred_check
        %p610 = pneg %p609
      $region54: #{tpu_custom_call.1} parent=5 // pred_check_branch
        %612 = sbr.rel (%p610) target = $region56
      $region55: #{tpu_custom_call.1} parent=5 // pred_region
        %s613 = ssub.s32 %s18, 2
        // Predicated region
        $region57: #{tpu_custom_call.1} parent=55 // pred_check
          %p614 = pneg %p152
        $region58: #{tpu_custom_call.1} parent=55 // pred_check_branch
          %616 = sbr.rel (%p614) target = $region60
        $region59: #{tpu_custom_call.1} parent=55 // pred_region
          %s617 = sand.u32 %s137, 1
          %s618 = scalar_lea.sflag [#allocation4], %s617
          %s619 = sand.u32 %s137, 1
          %s620 = smul.addr %s619, 16
          %s621 = scalar_lea.vmem [#allocation9], %s620
          %622 = dma.done %s618, 256
        $region60: #{tpu_custom_call.1} parent=55 // pred_fallthru
          _
      $region56: #{tpu_custom_call.1} parent=5 // pred_fallthru
        _
    $region6: #{tpu_custom_call.1} parent=1 // loop_footer
      %s22 = sadd.s32 1, %s18
    $region7: #{tpu_custom_call.1} parent=1 // loop_footer_branch
      %17 = sbr.rel target = $region3
    $region8: #{tpu_custom_call.1} parent=1 // loop_exit
      _
    %623 = vsyncpa [#allocation3], 1
    %s624 = scalar_lea.sflag [#allocation3], 1
    %625 = vsyncpa %s624, 1
    %626 = vsyncpa [#allocation8], 1
    %627 = vsyncpa [#allocation4], 1
    %s628 = scalar_lea.sflag [#allocation4], 1
    %629 = vsyncpa %s628, 1
    %630 = vsyncpa [#allocation5], 1
    %s631 = scalar_lea.sflag [#allocation5], 1
    %632 = vsyncpa %s631, 1

</llo_original>
